<compile_context>
chip_gen: v6e
topology: v6e:2x2x1
jax: 0.10.0
libtpu: 0.0.40
codegen_flags: <defaults>
</compile_context>

<pallas_src>
import functools

import jax
import jax.numpy as jnp
from jax.experimental import pallas as pl
from jax.experimental.pallas import tpu as pltpu


def _round_up(a, b):
    return (a + b - 1) // b * b


def _vmem_budget_bytes():
    """~5/8 of physical VMEM (≈40 MiB on v7x, ≈80 MiB on v5e/v6e)."""
    cap = None
    try:
        cap = getattr(pltpu.get_tpu_info(), "vmem_capacity_bytes", None)
    except Exception:
        cap = None
    if not cap:
        cap = 64 << 20  # conservative per-core fallback (v7x)
    return int(cap) * 5 // 8


def _vmem_limit(need_bytes):
    budget = _vmem_budget_bytes()
    return int(min(budget, max(16 << 20, 2 * need_bytes, need_bytes + (2 << 20))))


# ----------------------------------------------------------------------------------------------
# Kernel A: fused (rows, Cin) @ (Cin, Tt_pad) bf16 matmul + f32 bias + ReLU  (K <= stride path)
# ----------------------------------------------------------------------------------------------
def _matmul_bias_relu_kernel(x_ref, w_ref, b_ref, o_ref):
    acc = jnp.dot(x_ref[...], w_ref[...], preferred_element_type=jnp.float32)
    o_ref[...] = jnp.maximum(acc + b_ref[...], 0.0).astype(o_ref.dtype)


# ----------------------------------------------------------------------------------------------
# Kernel B: overlapping taps (K > stride), one batch-tile per grid step.  Per-tap MXU matmul
# accumulated into a VMEM f32 scratch, single ReLU + store at the end.  BN already folded.
# ----------------------------------------------------------------------------------------------
def _overlap_conv_kernel(x_ref, w_ref, b_ref, o_ref, acc_ref, *, K, stride):
    H, W, BN, Cin = x_ref.shape
    OH, OW, _, Cout = o_ref.shape

    x = x_ref[...].reshape(H * W * BN, Cin)

    acc_ref[...] = jnp.zeros_like(acc_ref)
    for kh in range(K):
        for kw in range(K):
            t = kh * K + kw
            # load this tap's weights from VMEM (no whole-weight hoist into vregs)
            contrib = jnp.dot(x, w_ref[t], preferred_element_type=jnp.float32) + b_ref[t]
            contrib = contrib.reshape(H, W, BN, Cout)
            sl_h = pl.ds(kh, H, stride) if stride > 1 else pl.ds(kh, H)
            sl_w = pl.ds(kw, W, stride) if stride > 1 else pl.ds(kw, W)
            acc_ref[sl_h, sl_w, :, :] = acc_ref[sl_h, sl_w, :, :] + contrib

    o_ref[...] = jnp.maximum(acc_ref[...], 0.0).astype(o_ref.dtype)


def decoder_conv_layer(x_nchw, weight, gamma, beta, *, kernel_size, stride, eps=1e-5,
                       block_rows=1024):
    """x_nchw: (N, Cin, H, W); weight: (Cin, Cout, K, K) (PyTorch ConvTranspose2d layout)."""
    N, Cin, H, W = x_nchw.shape
    Cout = weight.shape[1]
    K, s = kernel_size, stride
    OH = (H - 1) * s + K
    OW = (W - 1) * s + K

    x = x_nchw.astype(jnp.float32)
    gamma = gamma.astype(jnp.float32)
    beta = beta.astype(jnp.float32)

    if K <= s:
        # ---------------- Path A: non-overlapping taps -> one wide lane-dense matmul ----------
        R = N * H * W
        x_rows = jnp.transpose(x, (0, 2, 3, 1)).reshape(R, Cin)   # rows ordered (n, h, w)

        # One-pass BatchNorm batch stats (biased variance) from the single NHWC-row layout.
        mean = jnp.mean(x_rows, axis=0)
        var = jnp.maximum(jnp.mean(x_rows * x_rows, axis=0) - mean * mean, 0.0)
        scale = gamma * jax.lax.rsqrt(var + eps)
        shift = beta - mean * scale

        # Fold BN into the ConvT taps; zero-pad the tap grid to (s, s) when K < s, and pad the
        # fused slab width to a multiple of 128 lanes so output stores are lane-dense.
        w_taps = jnp.transpose(weight.astype(jnp.float32), (2, 3, 0, 1))  # (K, K, Cin, Cout)
        if K < s:
            w_taps = jnp.pad(w_taps, ((0, s - K), (0, s - K), (0, 0), (0, 0)))
        Tt = s * s * Cout
        Tt_pad = _round_up(Tt, 128)
        w_stack = jnp.transpose(w_taps, (2, 0, 1, 3)).reshape(Cin, Tt)    # (Cin, s*s*Cout)
        w_fused = w_stack * scale[:, None]                                # BN scale folded
        b_fused = (shift @ w_stack).reshape(1, Tt)                        # BN shift folded
        if Tt_pad > Tt:
            w_fused = jnp.pad(w_fused, ((0, 0), (0, Tt_pad - Tt)))
            b_fused = jnp.pad(b_fused, ((0, 0), (0, Tt_pad - Tt)))

        # bf16 matmul inputs; f32 accumulate / bias / ReLU inside the kernel.
        x_rows = x_rows.astype(jnp.bfloat16)
        w_fused = w_fused.astype(jnp.bfloat16)

        # Row tile: as large as block_rows but clamped so the grid has >= 2 steps (v7x megacore)
        # and bm is a multiple of 16 (bf16 sublane packing).
        bm = max(16, min(block_rows, pl.cdiv(R, 2)))
        bm = _round_up(bm, 16)
        R_pad = _round_up(R, bm)
        if R_pad > R:
            x_rows = jnp.pad(x_rows, ((0, R_pad - R), (0, 0)))

        need = (2 * bm * Cin * 2          # double-buffered bf16 activation tiles
                + 2 * Cin * Tt_pad * 2    # bf16 folded weights
                + 2 * Tt_pad * 4          # f32 bias
                + 3 * bm * Tt_pad * 4)    # double-buffered f32 output tiles + matmul result

        slab = pl.pallas_call(
            _matmul_bias_relu_kernel,
            out_shape=jax.ShapeDtypeStruct((R_pad, Tt_pad), jnp.float32),
            grid_spec=pltpu.PrefetchScalarGridSpec(
                num_scalar_prefetch=0,
                grid=(R_pad // bm,),
                in_specs=[
                    # NOTE: on v7x add pipeline_mode=pl.Buffered(3) here if profiling shows
                    # exposed DMA; 2-deep is enough on v5e/v6e.
                    pl.BlockSpec((bm, Cin), lambda i: (i, 0)),
                    pl.BlockSpec((Cin, Tt_pad), lambda i: (0, 0)),
                    pl.BlockSpec((1, Tt_pad), lambda i: (0, 0)),
                ],
                out_specs=pl.BlockSpec((bm, Tt_pad), lambda i: (i, 0)),
            ),
            compiler_params=pltpu.CompilerParams(
                dimension_semantics=("parallel",),
                vmem_limit_bytes=_vmem_limit(need),
            ),
        )(x_rows, w_fused, b_fused)

        # Pixel shuffle (single fused slice+reshape+transpose): (R, s*s*Cout) -> NCHW.
        # TODO(synk): a downstream NHWC consumer could read slab[:R, :Tt] directly (reshape only)
        # and skip this extra HBM pass; NCHW is kept to match the PyTorch module contract.
        slab = slab[:R, :Tt].reshape(N, H, W, s, s, Cout)
        out = jnp.transpose(slab, (0, 5, 1, 3, 2, 4)).reshape(N, Cout, H * s, W * s)
        return out[:, :, :OH, :OW]

    # ---------------- Path B: overlapping taps (K > stride), batch-tiled fallback ----------
    x_hwnc = jnp.transpose(x, (2, 3, 0, 1))                               # (H, W, N, Cin)

    # One-pass BN stats from the single transposed layout.
    mean = jnp.mean(x_hwnc, axis=(0, 1, 2))
    var = jnp.maximum(jnp.mean(x_hwnc * x_hwnc, axis=(0, 1, 2)) - mean * mean, 0.0)
    scale = gamma * jax.lax.rsqrt(var + eps)
    shift = beta - mean * scale

    w_taps = jnp.transpose(weight.astype(jnp.float32), (2, 3, 0, 1)).reshape(K * K, Cin, Cout)
    w_folded = w_taps * scale[None, :, None]                              # BN scale folded
    b_taps = jnp.einsum("c,tcd->td", shift, w_taps).reshape(K * K, 1, Cout)  # BN shift folded

    # Batch tile: keeps the minor (N_blk, Cout) tile's sublane axis full and bounds VMEM.
    bn = 8 if (N % 8 == 0 and N >= 8) else N

    need = (2 * H * W * bn * Cin * 4 + 2 * K * K * Cin * Cout * 4 + 2 * K * K * Cout * 4
            + 3 * OH * OW * bn * Cout * 4 + H * W * bn * Cout * 4)

    # TODO(synk): for Cout < 128 the minor (lane) dim is still partially masked; a lane-dense
    # (OH, OW, bn*Cout) accumulator layout would need an in-kernel sublane->lane relayout.
    out = pl.pallas_call(
        functools.partial(_overlap_conv_kernel, K=K, stride=s),
        out_shape=jax.ShapeDtypeStruct((OH, OW, N, Cout), jnp.float32),
        grid_spec=pltpu.PrefetchScalarGridSpec(
            num_scalar_prefetch=0,
            grid=(N // bn,),
            in_specs=[
                pl.BlockSpec((H, W, bn, Cin), lambda i: (0, 0, i, 0)),
                pl.BlockSpec((K * K, Cin, Cout), lambda i: (0, 0, 0)),
                pl.BlockSpec((K * K, 1, Cout), lambda i: (0, 0, 0)),
            ],
            out_specs=pl.BlockSpec((OH, OW, bn, Cout), lambda i: (0, 0, i, 0)),
            scratch_shapes=[pltpu.VMEM((OH, OW, bn, Cout), jnp.float32)],
        ),
        compiler_params=pltpu.CompilerParams(
            dimension_semantics=("parallel",),
            vmem_limit_bytes=_vmem_limit(need),
        ),
    )(x_hwnc, w_folded, b_taps)

    return jnp.transpose(out, (2, 3, 0, 1))                               # (N, Cout, OH, OW)


# ----------------------------------------------------------------------------------------------
# Pure-JAX reference matching PyTorch semantics (NCHW, training-mode BatchNorm)
# ----------------------------------------------------------------------------------------------
def torch_reference(x, w, gamma, beta, K, s, eps=1e-5):
    mean = x.mean(axis=(0, 2, 3), keepdims=True)
    var = ((x - mean) ** 2).mean(axis=(0, 2, 3), keepdims=True)
    xn = (x - mean) / jnp.sqrt(var + eps) * gamma[None, :, None, None] + beta[None, :, None, None]
    N, Cin, H, W = x.shape
    Cout = w.shape[1]
    OH, OW = (H - 1) * s + K, (W - 1) * s + K
    out = jnp.zeros((N, Cout, OH, OW), jnp.float32)
    for kh in range(K):
        for kw in range(K):
            contrib = jnp.einsum("nchw,cd->ndhw", xn, w[:, :, kh, kw])
            out = out.at[:, :, kh:kh + (H - 1) * s + 1:s, kw:kw + (W - 1) * s + 1:s].add(contrib)
    return jnp.maximum(out, 0.0)


if __name__ == "__main__":
    key = jax.random.PRNGKey(0)
    k1, k2, k3, k4, k5 = jax.random.split(key, 5)

    # Shapes consistent with the module: NCHW input, ConvTranspose2d(Cin->Cout, K, stride).
    N, Cin, H, W = 8, 8, 8, 8
    Cout, K, stride = 16, 2, 2

    x = jax.random.normal(k1, (N, Cin, H, W), dtype=jnp.float32)
    weight = 0.1 * jax.random.normal(k2, (Cin, Cout, K, K), dtype=jnp.float32)   # ConvT weight
    gamma = 1.0 + 0.1 * jax.random.normal(k3, (Cin,), dtype=jnp.float32)         # BN weight
    beta = 0.1 * jax.random.normal(k4, (Cin,), dtype=jnp.float32)                # BN bias

    # Case 1: K == stride -> fused bf16 single-matmul, lane-dense padded slab path.
    out = jax.block_until_ready(
        decoder_conv_layer(x, weight, gamma, beta, kernel_size=K, stride=stride))
    ref = torch_reference(x, weight, gamma, beta, K, stride)
    assert out.shape == ref.shape, (out.shape, ref.shape)
    assert jnp.allclose(out, ref, atol=3e-2, rtol=3e-2), float(jnp.max(jnp.abs(out - ref)))

    # Case 2: K > stride -> overlapping-tap, batch-tiled scratch-accumulator path (f32).
    K2, s2 = 3, 2
    weight2 = 0.1 * jax.random.normal(k5, (Cin, Cout, K2, K2), dtype=jnp.float32)
    out2 = jax.block_until_ready(
        decoder_conv_layer(x, weight2, gamma, beta, kernel_size=K2, stride=s2))
    ref2 = torch_reference(x, weight2, gamma, beta, K2, s2)
    assert out2.shape == ref2.shape, (out2.shape, ref2.shape)
    assert jnp.allclose(out2, ref2, atol=1e-3, rtol=1e-3), float(jnp.max(jnp.abs(out2 - ref2)))

    print("KERNEL_OK")
</pallas_src>

<mosaic_0001>
module attributes {stable_mosaic.version = 11 : i64} {
  func.func @_matmul_bias_relu_kernel(%arg0: i32, %arg1: memref<256x8xbf16, #tpu.memory_space<vmem>>, %arg2: memref<8x128xbf16, #tpu.memory_space<vmem>>, %arg3: memref<1x128xf32, #tpu.memory_space<vmem>>, %arg4: memref<256x128xf32, #tpu.memory_space<vmem>>) attributes {dimension_semantics = [#tpu.dimension_semantics<parallel>], iteration_bounds = array<i64: 2>, scalar_prefetch = 0 : i64, scratch_operands = 0 : i64, tpu.core_type = #tpu.core_type<tc>, window_params = [{transform_indices = @transform_0, window_bounds = array<i64: 256, 8>}, {pipeline_mode = #tpu.pipeline_mode<synchronous>, transform_indices = @transform_1, window_bounds = array<i64: 8, 128>}, {pipeline_mode = #tpu.pipeline_mode<synchronous>, transform_indices = @transform_2, window_bounds = array<i64: 1, 128>}, {transform_indices = @transform_3, window_bounds = array<i64: 256, 128>}]} {
    %c0 = arith.constant 0 : index
    %c0_0 = arith.constant 0 : index
    %0 = vector.load %arg1[%c0, %c0_0] : memref<256x8xbf16, #tpu.memory_space<vmem>>, vector<256x8xbf16>
    %c0_1 = arith.constant 0 : index
    %c0_2 = arith.constant 0 : index
    %1 = vector.load %arg2[%c0_1, %c0_2] : memref<8x128xbf16, #tpu.memory_space<vmem>>, vector<8x128xbf16>
    %cst = arith.constant dense<0.000000e+00> : vector<256x128xf32>
    %2 = tpu.matmul %0, %1, %cst {dimension_numbers = #tpu.dot_dimension_numbers<[1], [0], [0], [1], [0, 0, 1, 1], [], []>} : vector<256x8xbf16>, vector<8x128xbf16>, vector<256x128xf32> -> vector<256x128xf32>
    %c0_3 = arith.constant 0 : index
    %c0_4 = arith.constant 0 : index
    %3 = vector.load %arg3[%c0_3, %c0_4] : memref<1x128xf32, #tpu.memory_space<vmem>>, vector<1x128xf32>
    %4 = vector.broadcast %3 : vector<1x128xf32> to vector<256x128xf32>
    %5 = arith.addf %2, %4 : vector<256x128xf32>
    %cst_5 = arith.constant 0.000000e+00 : f32
    %6 = vector.broadcast %cst_5 : f32 to vector<256x128xf32>
    %7 = arith.maximumf %5, %6 : vector<256x128xf32>
    %c0_6 = arith.constant 0 : index
    %c0_7 = arith.constant 0 : index
    %8 = vector.load %arg4[%c0_6, %c0_7] : memref<256x128xf32, #tpu.memory_space<vmem>>, vector<256x128xf32>
    tpu.vector_store %arg4[%c0_6, %c0_7], %7 {strides = array<i32>} : memref<256x128xf32, #tpu.memory_space<vmem>>, vector<256x128xf32>,
    return
  }
  func.func @transform_0(%arg0: i32) -> (i32, i32) {
    %c0_i32 = arith.constant 0 : i32
    %c0_i32_0 = arith.constant 0 : i32
    return %arg0, %c0_i32 : i32, i32
  }
  func.func @transform_1(%arg0: i32) -> (i32, i32) {
    %c0_i32 = arith.constant 0 : i32
    %c0_i32_0 = arith.constant 0 : i32
    %c0_i32_1 = arith.constant 0 : i32
    return %c0_i32, %c0_i32_0 : i32, i32
  }
  func.func @transform_2(%arg0: i32) -> (i32, i32) {
    %c0_i32 = arith.constant 0 : i32
    %c0_i32_0 = arith.constant 0 : i32
    %c0_i32_1 = arith.constant 0 : i32
    return %c0_i32, %c0_i32_0 : i32, i32
  }
  func.func @transform_3(%arg0: i32) -> (i32, i32) {
    %c0_i32 = arith.constant 0 : i32
    %c0_i32_0 = arith.constant 0 : i32
    return %arg0, %c0_i32 : i32, i32
  }
}

</mosaic_0001>

<llo_original>
// kernel: tpu_custom_call.1
$region0: #{tpu_custom_call.1}
  #allocation0 [shape = 'u32[]', space=smem, size = 0x4, offset = 0x4, fixed_abs, tag = 'smem constant byte address 0x4 - core index']
  #allocation1 [shape = 'u32[144,128]{1,0:T(1,128)}', space=vmem, size = 0x12000, scoped, tag = 'internal scratch']
  %s0 = inlined_call_operand.vmem [shape: bf16[512,8], index: 0, kind: input, shape index: {}]
  %s1 = inlined_call_operand.vmem [shape: bf16[8,128], index: 1, kind: input, shape index: {}]
  %s2 = inlined_call_operand.vmem [shape: f32[1,128], index: 2, kind: input, shape index: {}]
  %s3 = inlined_call_operand.hbm [shape: f32[512,128], index: 3, kind: output, shape index: {}]
  %s4 = sld [smem:[#allocation0]]
  $region45: #{tpu_custom_call.1} parent=0
    _
  %s6 = ssub.s32 1, %s4
  %s7 = scalar_select 0, %s6, %s4
  $region1: #{tpu_custom_call.1} parent=0
    #allocation2 [shape = 'u8[262144]{0}', space=vmem, size = 0x40000, scoped, tag = 'output window, operand 0']
    #allocation3 [shape = 's32[2]{0}', space=sflag, size = 0x8, scoped, tag = 'scoped memory for tpu_custom_call.1']
    %8 = vsyncpa [#allocation3], 0
    %s9 = scalar_lea.sflag [#allocation3], 1
    %10 = vsyncpa %s9, 0
    loop: start=0, step=1, limit=4
    $region2: #{tpu_custom_call.1} parent=1 // loop_pre_header
      _
    $region3: #{tpu_custom_call.1} parent=1 // loop_header
      %s12 = sphi 0, %s16
      %p13 = scmp.ge.s32.totalorder %s12, 4
      %s22 = sphi 0, %s24
      %s25 = sphi 0, %s22
      %s26 = sphi 0, %s25
      %s42 = sphi 0, %s26
      %s46 = sphi 0, %s46
      %s48 = sphi 0, %s46
      %s49 = sphi 0, %s48
      %s63 = sphi 0, %s49
      %s67 = sphi 0, %s67
      %s69 = sphi 0, %s67
      %s70 = sphi 0, %s69
      %s84 = sphi 0, %s70
      %s90 = sphi 0, %s92
      %s93 = sphi 0, %s90
      %s94 = sphi 0, %s93
      %s110 = sphi 0, %s94
    $region4: #{tpu_custom_call.1} parent=1 // loop_header_branch
      %15 = sbr.rel (%p13) target = $region8
    $region5: #{tpu_custom_call.1} parent=1 // loop_body
      %s17 = ssub.s32 %s12, 1
      %s18 = ssub.s32 %s12, 2
      %s19 = sadd.s32 %s12, 1
      %s20 = ssub.s32 %s12, %s19
      %p21 = scmp.eq.s32.totalorder %s20, 0
      %s23 = sadd.s32 %s22, 1
      %s24 = scalar_select %p21, %s22, %s23
      %p27 = pneg %p21
      %p28 = scmp.eq.s32.totalorder %s12, 1
      %p29 = por %p27, %p28
      %p30 = scmp.ne.s32.totalorder %s22, %s25
      %p31 = scmp.eq.s32.totalorder %s12, 0
      %p32 = por %p30, %p31
      %p33 = scmp.ne.s32.totalorder %s22, %s25
      %p34 = scmp.eq.s32.totalorder %s17, 1
      %p35 = por %p33, %p34
      %p36 = scmp.ne.s32.totalorder %s25, %s26
      %p37 = scmp.eq.s32.totalorder %s17, 0
      %p38 = por %p36, %p37
      %p39 = scmp.ne.s32.totalorder %s25, %s26
      %p40 = scmp.eq.s32.totalorder %s18, 1
      %p41 = por %p39, %p40
      %p43 = scmp.ne.s32.totalorder %s26, %s42
      %p44 = scmp.eq.s32.totalorder %s18, 0
      %p45 = por %p43, %p44
      %s47 = sadd.s32 %s46, 1
      %p50 = scmp.eq.s32.totalorder %s12, 1
      %p51 = scmp.ne.s32.totalorder %s46, %s48
      %p52 = scmp.eq.s32.totalorder %s12, 0
      %p53 = por %p51, %p52
      %p54 = scmp.ne.s32.totalorder %s46, %s48
      %p55 = scmp.eq.s32.totalorder %s17, 1
      %p56 = por %p54, %p55
      %p57 = scmp.ne.s32.totalorder %s48, %s49
      %p58 = scmp.eq.s32.totalorder %s17, 0
      %p59 = por %p57, %p58
      %p60 = scmp.ne.s32.totalorder %s48, %s49
      %p61 = scmp.eq.s32.totalorder %s18, 1
      %p62 = por %p60, %p61
      %p64 = scmp.ne.s32.totalorder %s49, %s63
      %p65 = scmp.eq.s32.totalorder %s18, 0
      %p66 = por %p64, %p65
      %s68 = sadd.s32 %s67, 1
      %p71 = scmp.eq.s32.totalorder %s12, 1
      %p72 = scmp.ne.s32.totalorder %s67, %s69
      %p73 = scmp.eq.s32.totalorder %s12, 0
      %p74 = por %p72, %p73
      %p75 = scmp.ne.s32.totalorder %s67, %s69
      %p76 = scmp.eq.s32.totalorder %s17, 1
      %p77 = por %p75, %p76
      %p78 = scmp.ne.s32.totalorder %s69, %s70
      %p79 = scmp.eq.s32.totalorder %s17, 0
      %p80 = por %p78, %p79
      %p81 = scmp.ne.s32.totalorder %s69, %s70
      %p82 = scmp.eq.s32.totalorder %s18, 1
      %p83 = por %p81, %p82
      %p85 = scmp.ne.s32.totalorder %s70, %s84
      %p86 = scmp.eq.s32.totalorder %s18, 0
      %p87 = por %p85, %p86
      %s88 = ssub.s32 %s12, %s19
      %p89 = scmp.eq.s32.totalorder %s88, 0
      %s91 = sadd.s32 %s90, 1
      %s92 = scalar_select %p89, %s90, %s91
      %p95 = pneg %p89
      %p96 = scmp.eq.s32.totalorder %s12, 1
      %p97 = por %p95, %p96
      %p98 = scmp.ne.s32.totalorder %s90, %s93
      %p99 = scmp.eq.s32.totalorder %s12, 0
      %p100 = por %p98, %p99
      %p101 = scmp.ne.s32.totalorder %s90, %s93
      %p102 = scmp.eq.s32.totalorder %s17, 1
      %p103 = por %p101, %p102
      %p104 = scmp.ne.s32.totalorder %s93, %s94
      %p105 = scmp.eq.s32.totalorder %s17, 0
      %p106 = por %p104, %p105
      %p107 = scmp.ne.s32.totalorder %s93, %s94
      %p108 = scmp.eq.s32.totalorder %s18, 1
      %p109 = por %p107, %p108
      %p111 = scmp.ne.s32.totalorder %s94, %s110
      %p112 = scmp.eq.s32.totalorder %s18, 0
      %p113 = por %p111, %p112
      %p114 = scmp.le.s32.totalorder 1, %s12
      %p115 = scmp.lt.s32.totalorder %s12, 3
      %p116 = pnand %p114, %p115
      %p117 = pneg %p116
      // Predicated region
      $region9: #{tpu_custom_call.1} parent=5 // pred_check
        _
      $region10: #{tpu_custom_call.1} parent=5 // pred_check_branch
        %119 = sbr.rel (%p116) target = $region12
      $region11: #{tpu_custom_call.1} parent=5 // pred_region
        %s120 = ssub.s32 %s12, 1
        // Predicated region
        $region13: #{tpu_custom_call.1} parent=11 // pred_check
          %p121 = pneg %p59
        $region14: #{tpu_custom_call.1} parent=11 // pred_check_branch
          %123 = sbr.rel (%p121) target = $region16
        $region15: #{tpu_custom_call.1} parent=11 // pred_region
          _
        $region16: #{tpu_custom_call.1} parent=11 // pred_fallthru
          _
        // Predicated region
        $region17: #{tpu_custom_call.1} parent=11 // pred_check
          %p124 = pneg %p80
        $region18: #{tpu_custom_call.1} parent=11 // pred_check_branch
          %126 = sbr.rel (%p124) target = $region20
        $region19: #{tpu_custom_call.1} parent=11 // pred_region
          _
        $region20: #{tpu_custom_call.1} parent=11 // pred_fallthru
          _
      $region12: #{tpu_custom_call.1} parent=5 // pred_fallthru
        _
      %p127 = scmp.lt.s32.totalorder %s12, 2
      // Predicated region
      $region21: #{tpu_custom_call.1} parent=5 // pred_check
        %p128 = pneg %p127
      $region22: #{tpu_custom_call.1} parent=5 // pred_check_branch
        %130 = sbr.rel (%p128) target = $region24
      $region23: #{tpu_custom_call.1} parent=5 // pred_region
        // Predicated region
        $region25: #{tpu_custom_call.1} parent=23 // pred_check
          %p131 = pneg %p32
        $region26: #{tpu_custom_call.1} parent=23 // pred_check_branch
          %133 = sbr.rel (%p131) target = $region28
        $region27: #{tpu_custom_call.1} parent=23 // pred_region
          %s134 = smul.u32 32, %s12
          %p135 = scmp.lt.s32.totalorder %s134, 63
          %s136 = scalar_select %p135, %s134, 63
          %s137 = smul.addr %s136, 4
          %s138 = scalar_lea.vmem %s0, %s137
          %s139 = smul.u32 32, %s12
        $region28: #{tpu_custom_call.1} parent=23 // pred_fallthru
          _
      $region24: #{tpu_custom_call.1} parent=5 // pred_fallthru
        _
      %p140 = scmp.le.s32.totalorder 1, %s12
      %p141 = scmp.lt.s32.totalorder %s12, 3
      %p142 = pnand %p140, %p141
      %p143 = pneg %p142
      // Predicated region
      $region29: #{tpu_custom_call.1} parent=5 // pred_check
        _
      $region30: #{tpu_custom_call.1} parent=5 // pred_check_branch
        %145 = sbr.rel (%p142) target = $region32
      $region31: #{tpu_custom_call.1} parent=5 // pred_region
        %s146 = ssub.s32 %s12, 1
        %s147 = smul.u32 32, %s17
        %p148 = scmp.lt.s32.totalorder %s147, 63
        %s149 = scalar_select %p148, %s147, 63
        %s150 = smul.addr %s149, 4
        %s151 = scalar_lea.vmem %s0, %s150
        %p152 = pneg %p38
        %p153 = pneg %p35
        %p154 = pneg %p59
        %p155 = pneg %p56
        %p156 = pneg %p80
        %p157 = pneg %p77
        %p158 = pneg %p106
        %p159 = pneg %p103
        %s160 = sand.u32 %s93, 1
        %s161 = scalar_lea.sflag [#allocation3], %s160
        %s162 = sand.u32 %s93, 1
        %s163 = smul.addr %s162, 256
        %s164 = scalar_lea.vmem [#allocation2], %s163
        %s165 = smul.u32 32, %s17
        %p166 = scmp.lt.s32.totalorder %s165, 63
        %s167 = scalar_select %p166, %s165, 63
        %s168 = smul.addr %s167, 4
        %s169 = scalar_lea.vmem %s0, %s168
        %s170 = smul.u32 32, %s17
        %s171 = smul.u32 32, %s17
        %v173 = vld [vmem:[%s169] sm:$0xf]
        %v174 = vld [vmem:[%s169 + $0x4] sm:$0xf]
        %v175 = vld [vmem:[%s169 + $0x8] sm:$0xf]
        %v176 = vld [vmem:[%s169 + $0xc] sm:$0xf]
        %v177 = vld [vmem:[%s169 + $0x10] sm:$0xf]
        %v178 = vld [vmem:[%s169 + $0x14] sm:$0xf]
        %v179 = vld [vmem:[%s169 + $0x18] sm:$0xf]
        %v180 = vld [vmem:[%s169 + $0x1c] sm:$0xf]
        %v181 = vld [vmem:[%s169 + $0x20] sm:$0xf]
        %v182 = vld [vmem:[%s169 + $0x24] sm:$0xf]
        %v183 = vld [vmem:[%s169 + $0x28] sm:$0xf]
        %v184 = vld [vmem:[%s169 + $0x2c] sm:$0xf]
        %v185 = vld [vmem:[%s169 + $0x30] sm:$0xf]
        %v186 = vld [vmem:[%s169 + $0x34] sm:$0xf]
        %v187 = vld [vmem:[%s169 + $0x38] sm:$0xf]
        %v188 = vld [vmem:[%s169 + $0x3c] sm:$0xf]
        %v189 = vld [vmem:[%s169 + $0x40] sm:$0xf]
        %v190 = vld [vmem:[%s169 + $0x44] sm:$0xf]
        %v191 = vld [vmem:[%s169 + $0x48] sm:$0xf]
        %v192 = vld [vmem:[%s169 + $0x4c] sm:$0xf]
        %v193 = vld [vmem:[%s169 + $0x50] sm:$0xf]
        %v194 = vld [vmem:[%s169 + $0x54] sm:$0xf]
        %v195 = vld [vmem:[%s169 + $0x58] sm:$0xf]
        %v196 = vld [vmem:[%s169 + $0x5c] sm:$0xf]
        %v197 = vld [vmem:[%s169 + $0x60] sm:$0xf]
        %v198 = vld [vmem:[%s169 + $0x64] sm:$0xf]
        %v199 = vld [vmem:[%s169 + $0x68] sm:$0xf]
        %v200 = vld [vmem:[%s169 + $0x6c] sm:$0xf]
        %v201 = vld [vmem:[%s169 + $0x70] sm:$0xf]
        %v202 = vld [vmem:[%s169 + $0x74] sm:$0xf]
        %v203 = vld [vmem:[%s169 + $0x78] sm:$0xf]
        %v204 = vld [vmem:[%s169 + $0x7c] sm:$0xf]
        %v205 = vld [vmem:[%s1] sm:$0xf]
        %v206 = vld [vmem:[%s2] sm:$0x1]
        %v208 = vlaneseq
        %v209 = vshrl.u32 %v208, 7
        %v210 = vsub.s32 0, %v209
        %v211 = vrot.slane %v206, %v210
        %v245 = vunpack.c.l.b16 %v173
        %v246 = vunpack.c.l.b16 %v174
        %v247 = vunpack.c.l.b16 %v175
        %v248 = vunpack.c.l.b16 %v176
        %v249 = vunpack.c.l.b16 %v177
        %v250 = vunpack.c.l.b16 %v178
        %v251 = vunpack.c.l.b16 %v179
        %v252 = vunpack.c.l.b16 %v180
        %v253 = vunpack.c.l.b16 %v181
        %v254 = vunpack.c.l.b16 %v182
        %v255 = vunpack.c.l.b16 %v183
        %v256 = vunpack.c.l.b16 %v184
        %v257 = vunpack.c.l.b16 %v185
        %v258 = vunpack.c.l.b16 %v186
        %v259 = vunpack.c.l.b16 %v187
        %v260 = vunpack.c.l.b16 %v188
        %v261 = vunpack.c.l.b16 %v189
        %v262 = vunpack.c.l.b16 %v190
        %v263 = vunpack.c.l.b16 %v191
        %v264 = vunpack.c.l.b16 %v192
        %v265 = vunpack.c.l.b16 %v193
        %v266 = vunpack.c.l.b16 %v194
        %v267 = vunpack.c.l.b16 %v195
        %v268 = vunpack.c.l.b16 %v196
        %v269 = vunpack.c.l.b16 %v197
        %v270 = vunpack.c.l.b16 %v198
        %v271 = vunpack.c.l.b16 %v199
        %v272 = vunpack.c.l.b16 %v200
        %v273 = vunpack.c.l.b16 %v201
        %v274 = vunpack.c.l.b16 %v202
        %v275 = vunpack.c.l.b16 %v203
        %v276 = vunpack.c.l.b16 %v204
        %v277 = vpack.c.b16 %v246, %v245
        %v278 = vpack.c.b16 %v248, %v247
        %v279 = vpack.c.b16 %v250, %v249
        %v280 = vpack.c.b16 %v252, %v251
        %v281 = vpack.c.b16 %v254, %v253
        %v282 = vpack.c.b16 %v256, %v255
        %v283 = vpack.c.b16 %v258, %v257
        %v284 = vpack.c.b16 %v260, %v259
        %v285 = vpack.c.b16 %v262, %v261
        %v286 = vpack.c.b16 %v264, %v263
        %v287 = vpack.c.b16 %v266, %v265
        %v288 = vpack.c.b16 %v268, %v267
        %v289 = vpack.c.b16 %v270, %v269
        %v290 = vpack.c.b16 %v272, %v271
        %v291 = vpack.c.b16 %v274, %v273
        %v292 = vpack.c.b16 %v276, %v275
        %vm293 = vcmask 64512
        %v295 = vsel %vm293, %v277, 0
        %v298 = vsel %vm293, %v278, 0
        %v301 = vsel %vm293, %v279, 0
        %v304 = vsel %vm293, %v280, 0
        %v307 = vsel %vm293, %v281, 0
        %v310 = vsel %vm293, %v282, 0
        %v313 = vsel %vm293, %v283, 0
        %v316 = vsel %vm293, %v284, 0
        %v319 = vsel %vm293, %v285, 0
        %v322 = vsel %vm293, %v286, 0
        %v325 = vsel %vm293, %v287, 0
        %v328 = vsel %vm293, %v288, 0
        %v331 = vsel %vm293, %v289, 0
        %v334 = vsel %vm293, %v290, 0
        %v337 = vsel %vm293, %v291, 0
        %v340 = vsel %vm293, %v292, 0
        %vm342 = vcmask 1043456
        %v344 = vsel %vm342, %v205, 0
        %346 = vmatprep.subr.bf16.mxu0 0
        %347 = vmatpush1.bf16.msra.mxu0 0
        %348 = vmatprep.subr.bf16.mxu0 0
        %349 = vmatpush1.bf16.msra.mxu0 0
        %350 = vmatprep.subr.bf16.mxu0 0
        %351 = vmatpush1.bf16.msra.mxu0 0
        %352 = vmatprep.subr.bf16.mxu0 0
        %353 = vmatpush1.bf16.msra.mxu0 0
        %354 = vmatprep.subr.bf16.mxu0 0
        %355 = vmatpush1.bf16.msra.mxu0 0
        %356 = vmatprep.subr.bf16.mxu0 0
        %357 = vmatpush1.bf16.msra.mxu0 0
        %358 = vmatprep.subr.bf16.mxu0 0
        %359 = vmatpush1.bf16.msra.mxu0 0
        %360 = vmatprep.subr.bf16.mxu0 0
        %361 = vmatpush1.bf16.msra.mxu0 %v344
        %362 = vmatprep.subr.bf16.mxu0 0
        %363 = vmatpush2.bf16.msra.mxu0 0
        %364 = vmatprep.subr.bf16.mxu0 0
        %365 = vmatpush2.bf16.msra.mxu0 0
        %366 = vmatprep.subr.bf16.mxu0 0
        %367 = vmatpush2.bf16.msra.mxu0 0
        %368 = vmatprep.subr.bf16.mxu0 0
        %369 = vmatpush2.bf16.msra.mxu0 0
        %370 = vmatprep.subr.bf16.mxu0 0
        %371 = vmatpush2.bf16.msra.mxu0 0
        %372 = vmatprep.subr.bf16.mxu0 0
        %373 = vmatpush2.bf16.msra.mxu0 0
        %374 = vmatprep.subr.bf16.mxu0 0
        %375 = vmatpush2.bf16.msra.mxu0 0
        %376 = vmatprep.subr.bf16.mxu0 0
        %377 = vmatpush2.bf16.msra.mxu0 0
        %378 = vmatprep.mubr.bf16.mxu0 0
        %379 = vmatmul.mubr.bf16.gmra.mxu0 %v295
        %v380 = vpop.f32.mrf.mxu0
        %v381 = vadd.f32 %v211, %v380
        %v382 = vpop.f32.mrf.mxu0
        %v383 = vpop.f32.mrf.mxu0
        %v384 = vadd.f32 %v211, %v383
        %v385 = vpop.f32.mrf.mxu0
        %386 = vmatprep.mubr.bf16.mxu0 0
        %387 = vmatmul.mubr.bf16.gmra.mxu0 %v298
        %v388 = vpop.f32.mrf.mxu0
        %v389 = vadd.f32 %v211, %v388
        %v390 = vpop.f32.mrf.mxu0
        %v391 = vpop.f32.mrf.mxu0
        %v392 = vadd.f32 %v211, %v391
        %v393 = vpop.f32.mrf.mxu0
        %394 = vmatprep.mubr.bf16.mxu0 0
        %395 = vmatmul.mubr.bf16.gmra.mxu0 %v301
        %v396 = vpop.f32.mrf.mxu0
        %v397 = vadd.f32 %v211, %v396
        %v398 = vpop.f32.mrf.mxu0
        %v399 = vpop.f32.mrf.mxu0
        %v400 = vadd.f32 %v211, %v399
        %v401 = vpop.f32.mrf.mxu0
        %402 = vmatprep.mubr.bf16.mxu0 0
        %403 = vmatmul.mubr.bf16.gmra.mxu0 %v304
        %v404 = vpop.f32.mrf.mxu0
        %v405 = vadd.f32 %v211, %v404
        %v406 = vpop.f32.mrf.mxu0
        %v407 = vpop.f32.mrf.mxu0
        %v408 = vadd.f32 %v211, %v407
        %v409 = vpop.f32.mrf.mxu0
        %410 = vmatprep.mubr.bf16.mxu0 0
        %411 = vmatmul.mubr.bf16.gmra.mxu0 %v307
        %v412 = vpop.f32.mrf.mxu0
        %v413 = vadd.f32 %v211, %v412
        %v414 = vpop.f32.mrf.mxu0
        %v415 = vpop.f32.mrf.mxu0
        %v416 = vadd.f32 %v211, %v415
        %v417 = vpop.f32.mrf.mxu0
        %418 = vmatprep.mubr.bf16.mxu0 0
        %419 = vmatmul.mubr.bf16.gmra.mxu0 %v310
        %v420 = vpop.f32.mrf.mxu0
        %v421 = vadd.f32 %v211, %v420
        %v422 = vpop.f32.mrf.mxu0
        %v423 = vpop.f32.mrf.mxu0
        %v424 = vadd.f32 %v211, %v423
        %v425 = vpop.f32.mrf.mxu0
        %426 = vmatprep.mubr.bf16.mxu0 0
        %427 = vmatmul.mubr.bf16.gmra.mxu0 %v313
        %v428 = vpop.f32.mrf.mxu0
        %v429 = vadd.f32 %v211, %v428
        %v430 = vpop.f32.mrf.mxu0
        %v431 = vpop.f32.mrf.mxu0
        %v432 = vadd.f32 %v211, %v431
        %v433 = vpop.f32.mrf.mxu0
        %434 = vmatprep.mubr.bf16.mxu0 0
        %435 = vmatmul.mubr.bf16.gmra.mxu0 %v316
        %v436 = vpop.f32.mrf.mxu0
        %v437 = vadd.f32 %v211, %v436
        %v438 = vpop.f32.mrf.mxu0
        %v439 = vpop.f32.mrf.mxu0
        %v440 = vadd.f32 %v211, %v439
        %v441 = vpop.f32.mrf.mxu0
        %442 = vmatprep.mubr.bf16.mxu0 0
        %443 = vmatmul.mubr.bf16.gmra.mxu0 %v319
        %v444 = vpop.f32.mrf.mxu0
        %v445 = vadd.f32 %v211, %v444
        %v446 = vpop.f32.mrf.mxu0
        %v447 = vpop.f32.mrf.mxu0
        %v448 = vadd.f32 %v211, %v447
        %v449 = vpop.f32.mrf.mxu0
        %450 = vmatprep.mubr.bf16.mxu0 0
        %451 = vmatmul.mubr.bf16.gmra.mxu0 %v322
        %v452 = vpop.f32.mrf.mxu0
        %v453 = vadd.f32 %v211, %v452
        %v454 = vpop.f32.mrf.mxu0
        %v455 = vpop.f32.mrf.mxu0
        %v456 = vadd.f32 %v211, %v455
        %v457 = vpop.f32.mrf.mxu0
        %458 = vmatprep.mubr.bf16.mxu0 0
        %459 = vmatmul.mubr.bf16.gmra.mxu0 %v325
        %v460 = vpop.f32.mrf.mxu0
        %v461 = vadd.f32 %v211, %v460
        %v462 = vpop.f32.mrf.mxu0
        %v463 = vpop.f32.mrf.mxu0
        %v464 = vadd.f32 %v211, %v463
        %v465 = vpop.f32.mrf.mxu0
        %466 = vmatprep.mubr.bf16.mxu0 0
        %467 = vmatmul.mubr.bf16.gmra.mxu0 %v328
        %v468 = vpop.f32.mrf.mxu0
        %v469 = vadd.f32 %v211, %v468
        %v470 = vpop.f32.mrf.mxu0
        %v471 = vpop.f32.mrf.mxu0
        %v472 = vadd.f32 %v211, %v471
        %v473 = vpop.f32.mrf.mxu0
        %474 = vmatprep.mubr.bf16.mxu0 0
        %475 = vmatmul.mubr.bf16.gmra.mxu0 %v331
        %v476 = vpop.f32.mrf.mxu0
        %v477 = vadd.f32 %v211, %v476
        %v478 = vpop.f32.mrf.mxu0
        %v479 = vpop.f32.mrf.mxu0
        %v480 = vadd.f32 %v211, %v479
        %v481 = vpop.f32.mrf.mxu0
        %482 = vmatprep.mubr.bf16.mxu0 0
        %483 = vmatmul.mubr.bf16.gmra.mxu0 %v334
        %v484 = vpop.f32.mrf.mxu0
        %v485 = vadd.f32 %v211, %v484
        %v486 = vpop.f32.mrf.mxu0
        %v487 = vpop.f32.mrf.mxu0
        %v488 = vadd.f32 %v211, %v487
        %v489 = vpop.f32.mrf.mxu0
        %490 = vmatprep.mubr.bf16.mxu0 0
        %491 = vmatmul.mubr.bf16.gmra.mxu0 %v337
        %v492 = vpop.f32.mrf.mxu0
        %v493 = vadd.f32 %v211, %v492
        %v494 = vpop.f32.mrf.mxu0
        %v495 = vpop.f32.mrf.mxu0
        %v496 = vadd.f32 %v211, %v495
        %v497 = vpop.f32.mrf.mxu0
        %498 = vmatprep.mubr.bf16.mxu0 0
        %499 = vmatmul.mubr.bf16.gmra.mxu0 %v340
        %v500 = vpop.f32.mrf.mxu0
        %v501 = vadd.f32 %v211, %v500
        %v502 = vpop.f32.mrf.mxu0
        %v503 = vpop.f32.mrf.mxu0
        %v504 = vadd.f32 %v211, %v503
        %v505 = vpop.f32.mrf.mxu0
        %506 = vdwg.mxu0
        %v507 = vmax.f32 %v381, 0.0
        %v508 = vmax.f32 %v384, 0.0
        %v509 = vmax.f32 %v389, 0.0
        %v510 = vmax.f32 %v392, 0.0
        %v511 = vmax.f32 %v397, 0.0
        %v512 = vmax.f32 %v400, 0.0
        %v513 = vmax.f32 %v405, 0.0
        %v514 = vmax.f32 %v408, 0.0
        %v515 = vmax.f32 %v413, 0.0
        %v516 = vmax.f32 %v416, 0.0
        %v517 = vmax.f32 %v421, 0.0
        %v518 = vmax.f32 %v424, 0.0
        %v519 = vmax.f32 %v429, 0.0
        %v520 = vmax.f32 %v432, 0.0
        %v521 = vmax.f32 %v437, 0.0
        %v522 = vmax.f32 %v440, 0.0
        %v523 = vmax.f32 %v445, 0.0
        %v524 = vmax.f32 %v448, 0.0
        %v525 = vmax.f32 %v453, 0.0
        %v526 = vmax.f32 %v456, 0.0
        %v527 = vmax.f32 %v461, 0.0
        %v528 = vmax.f32 %v464, 0.0
        %v529 = vmax.f32 %v469, 0.0
        %v530 = vmax.f32 %v472, 0.0
        %v531 = vmax.f32 %v477, 0.0
        %v532 = vmax.f32 %v480, 0.0
        %v533 = vmax.f32 %v485, 0.0
        %v534 = vmax.f32 %v488, 0.0
        %v535 = vmax.f32 %v493, 0.0
        %v536 = vmax.f32 %v496, 0.0
        %v537 = vmax.f32 %v501, 0.0
        %v538 = vmax.f32 %v504, 0.0
        %539 = vst [vmem:[%s164] sm:$0xff] %v507
        %540 = vst [vmem:[%s164 + $0x8] sm:$0xff] %v508
        %541 = vst [vmem:[%s164 + $0x10] sm:$0xff] %v509
        %542 = vst [vmem:[%s164 + $0x18] sm:$0xff] %v510
        %543 = vst [vmem:[%s164 + $0x20] sm:$0xff] %v511
        %544 = vst [vmem:[%s164 + $0x28] sm:$0xff] %v512
        %545 = vst [vmem:[%s164 + $0x30] sm:$0xff] %v513
        %546 = vst [vmem:[%s164 + $0x38] sm:$0xff] %v514
        %547 = vst [vmem:[%s164 + $0x40] sm:$0xff] %v515
        %548 = vst [vmem:[%s164 + $0x48] sm:$0xff] %v516
        %549 = vst [vmem:[%s164 + $0x50] sm:$0xff] %v517
        %550 = vst [vmem:[%s164 + $0x58] sm:$0xff] %v518
        %551 = vst [vmem:[%s164 + $0x60] sm:$0xff] %v519
        %552 = vst [vmem:[%s164 + $0x68] sm:$0xff] %v520
        %553 = vst [vmem:[%s164 + $0x70] sm:$0xff] %v521
        %554 = vst [vmem:[%s164 + $0x78] sm:$0xff] %v522
        %555 = vst [vmem:[%s164 + $0x80] sm:$0xff] %v523
        %556 = vst [vmem:[%s164 + $0x88] sm:$0xff] %v524
        %557 = vst [vmem:[%s164 + $0x90] sm:$0xff] %v525
        %558 = vst [vmem:[%s164 + $0x98] sm:$0xff] %v526
        %559 = vst [vmem:[%s164 + $0xa0] sm:$0xff] %v527
        %560 = vst [vmem:[%s164 + $0xa8] sm:$0xff] %v528
        %561 = vst [vmem:[%s164 + $0xb0] sm:$0xff] %v529
        %562 = vst [vmem:[%s164 + $0xb8] sm:$0xff] %v530
        %563 = vst [vmem:[%s164 + $0xc0] sm:$0xff] %v531
        %564 = vst [vmem:[%s164 + $0xc8] sm:$0xff] %v532
        %565 = vst [vmem:[%s164 + $0xd0] sm:$0xff] %v533
        %566 = vst [vmem:[%s164 + $0xd8] sm:$0xff] %v534
        %567 = vst [vmem:[%s164 + $0xe0] sm:$0xff] %v535
        %568 = vst [vmem:[%s164 + $0xe8] sm:$0xff] %v536
        %569 = vst [vmem:[%s164 + $0xf0] sm:$0xff] %v537
        %570 = vst [vmem:[%s164 + $0xf8] sm:$0xff] %v538
        %s571 = sand.u32 %s93, 1
        %s572 = scalar_lea.sflag [#allocation3], %s571
        %s573 = sand.u32 %s93, 1
        %s574 = smul.addr %s573, 256
        %s575 = scalar_lea.vmem [#allocation2], %s574
        // Predicated region
        $region33: #{tpu_custom_call.1} parent=31 // pred_check
          %p576 = pneg %p103
        $region34: #{tpu_custom_call.1} parent=31 // pred_check_branch
          %578 = sbr.rel (%p576) target = $region36
        $region35: #{tpu_custom_call.1} parent=31 // pred_region
          %s579 = smul.u32 32, %s17
          %s581 = ssub.s32 4096, 4096
          %582 = vsyncadd %s572, %s581
          %s583 = smul.addr %s579, 128
          %s584 = scalar_lea.hbm %s3, %s583
          %s585 = sshll.u32 %s575, 4
          %s586 = int_to_ptr.vmem [resolvable:$true] %s585
          %591 = dma.vmem_to_hbm [thread:$0]  %s586, 4096, %s584, %s572, 128, 128, 8
        $region36: #{tpu_custom_call.1} parent=31 // pred_fallthru
          _
      $region32: #{tpu_custom_call.1} parent=5 // pred_fallthru
        _
      %p592 = scmp.le.s32.totalorder 2, %s12
      // Predicated region
      $region37: #{tpu_custom_call.1} parent=5 // pred_check
        %p593 = pneg %p592
      $region38: #{tpu_custom_call.1} parent=5 // pred_check_branch
        %595 = sbr.rel (%p593) target = $region40
      $region39: #{tpu_custom_call.1} parent=5 // pred_region
        %s596 = ssub.s32 %s12, 2
        // Predicated region
        $region41: #{tpu_custom_call.1} parent=39 // pred_check
          %p597 = pneg %p109
        $region42: #{tpu_custom_call.1} parent=39 // pred_check_branch
          %599 = sbr.rel (%p597) target = $region44
        $region43: #{tpu_custom_call.1} parent=39 // pred_region
          %s600 = sand.u32 %s94, 1
          %s601 = scalar_lea.sflag [#allocation3], %s600
          %s602 = sand.u32 %s94, 1
          %s603 = smul.addr %s602, 256
          %s604 = scalar_lea.vmem [#allocation2], %s603
          %605 = dma.done %s601, 4096
        $region44: #{tpu_custom_call.1} parent=39 // pred_fallthru
          _
      $region40: #{tpu_custom_call.1} parent=5 // pred_fallthru
        _
    $region6: #{tpu_custom_call.1} parent=1 // loop_footer
      %s16 = sadd.s32 1, %s12
    $region7: #{tpu_custom_call.1} parent=1 // loop_footer_branch
      %11 = sbr.rel target = $region3
    $region8: #{tpu_custom_call.1} parent=1 // loop_exit
      _
    %606 = vsyncpa [#allocation3], 1
    %s607 = scalar_lea.sflag [#allocation3], 1
    %608 = vsyncpa %s607, 1

</llo_original>
